<compile_context>
chip_gen: v6e
topology: v6e:2x2x1
jax: 0.10.0
libtpu: 0.0.40
codegen_flags: <defaults>
</compile_context>

<pallas_src>
import jax
import jax.numpy as jnp
from jax import lax
from jax.experimental import pallas as pl
from jax.experimental.pallas import tpu as pltpu


# ----------------------------------------------------------------------------
# Pallas kernel: SharedMLP (1x1 conv + folded-BN + ReLU) x2  +  max over nsample
# Grid: (B, npoint_tiles, nsample); nsample innermost reduction ("arbitrary").
# ----------------------------------------------------------------------------
def _shared_mlp_maxpool_kernel(x_ref, w1_ref, b1_ref, w2_ref, b2_ref, o_ref,
                               acc_ref):
    s = pl.program_id(2)

    # Layer 1: 1x1 conv == (tile_m, Cin) @ (Cin, 256) on the MXU.
    # x_ref is already bf16 (cast in the wrapper); accumulate in f32.
    h = jnp.dot(x_ref[...], w1_ref[...], preferred_element_type=jnp.float32)
    h = jnp.maximum(h + b1_ref[...], 0.0).astype(jnp.bfloat16)  # ReLU + cast fused

    # Layer 2: (tile_m, 256) @ (256, 256), f32 accumulation; bias + ReLU on VPU.
    h = jnp.dot(h, w2_ref[...], preferred_element_type=jnp.float32)
    h = jnp.maximum(h + b2_ref[...], 0.0)

    # Max-pool over nsample == running elementwise max into a (tile_m, 256) f32
    # VMEM accumulator (pure VPU, no cross-sublane reduce / relayout).
    @pl.when(s == 0)
    def _():
        acc_ref[...] = h

    @pl.when(s != 0)
    def _():
        acc_ref[...] = jnp.maximum(acc_ref[...], h)

    @pl.when(s == pl.num_programs(2) - 1)
    def _():
        # Single lane-dense (tile_m, 256) store per (batch, tile).
        o_ref[...] = acc_ref[...].astype(o_ref.dtype)


def shared_mlp_maxpool(x, w1, b1, w2, b2, *, tile_m=512):
    """x: (B, nsample, N, Cin) bf16 -> (B, N, Cout) f32.

    w1/w2 are bf16 with the eval-mode BatchNorm scale pre-folded; b1/b2 f32 (1,C).
    """
    B, ns, N, cin = x.shape
    c1 = w1.shape[1]
    cout = w2.shape[1]

    # Tile selection: tile_m rows of the npoint axis per grid step, multiple of 8.
    # Per-sample chunking keeps the working set tiny, so large tiles are safe on
    # every generation (incl. v7x's 64 MiB VMEM).
    n8 = ((N + 7) // 8) * 8
    tm = max(8, (min(tile_m, n8) // 8) * 8)
    n_pad = pl.cdiv(N, tm) * tm
    if n_pad != N:
        # Padded rows produce relu(bias) garbage; sliced off below.
        x = jnp.pad(x, ((0, 0), (0, 0), (0, n_pad - N), (0, 0)))

    grid = (B, n_pad // tm, ns)

    # VMEM limit derived from the working set (double-buffered tiles + f32 temp
    # headroom), clamped to a range that is safe on v5e/v6e/v7x.
    lane = 128
    vmem_need = (
        2 * tm * max(cin, lane) * 2                 # x tile (bf16, lane-padded), 2 bufs
        + 2 * (w1.size + w2.size) * 2               # bf16 weights, 2 bufs
        + 2 * (b1.size + b2.size) * 4
        + 2 * tm * cout * 4                         # output tile, 2 bufs
        + tm * cout * 4                             # acc scratch
        + 8 * tm * cout * 4                         # in-flight f32/bf16 temps
    )
    vmem_limit = int(min(max(2 * vmem_need, 16 * 1024 * 1024), 48 * 1024 * 1024))

    flops = 2 * B * n_pad * ns * (cin * c1 + c1 * cout)
    bytes_accessed = (B * ns * n_pad * cin * x.dtype.itemsize
                      + B * n_pad * cout * 4
                      + (w1.size + w2.size) * 2
                      + (b1.size + b2.size) * 4)

    out = pl.pallas_call(
        _shared_mlp_maxpool_kernel,
        out_shape=jax.ShapeDtypeStruct((B, n_pad, cout), jnp.float32),
        grid_spec=pltpu.PrefetchScalarGridSpec(
            num_scalar_prefetch=0,
            grid=grid,
            in_specs=[
                # activations: (b, sample, tile, channels) -> kernel sees (tm, cin)
                pl.BlockSpec((None, None, tm, cin), lambda b, i, s: (b, s, i, 0)),
                # constant operands (fetched once; constant index_map)
                pl.BlockSpec((cin, c1), lambda b, i, s: (0, 0)),
                pl.BlockSpec((1, c1), lambda b, i, s: (0, 0)),
                pl.BlockSpec((c1, cout), lambda b, i, s: (0, 0)),
                pl.BlockSpec((1, cout), lambda b, i, s: (0, 0)),
            ],
            out_specs=pl.BlockSpec((None, tm, cout), lambda b, i, s: (b, i, 0)),
            scratch_shapes=[pltpu.VMEM((tm, cout), jnp.float32)],
        ),
        compiler_params=pltpu.CompilerParams(
            dimension_semantics=("parallel", "parallel", "arbitrary"),
            vmem_limit_bytes=vmem_limit),
        cost_estimate=pl.CostEstimate(
            flops=flops, transcendentals=0, bytes_accessed=bytes_accessed),
    )(x, w1, b1, w2, b2)
    return out[:, :N]


# ----------------------------------------------------------------------------
# CylinderQueryAndGroup (plain JAX glue; matches the CUDA cylinder_query
# semantics: first `nsample` in-cylinder indices in point order, padded with the
# first hit, 0 if no hit).  Produces the grouped tensor nsample-outermost,
# channels-last and bf16 so the kernel needs no extra relayout pass.
# ----------------------------------------------------------------------------
def cylinder_query_and_group(seed_xyz, seed_feat, vp_rot, *,
                             radius, hmin, hmax, nsample,
                             out_dtype=jnp.bfloat16):
    """seed_xyz (B,N,3), seed_feat (B,C,N), vp_rot (B,N,9)
       -> grouped (B, nsample, N, 3+C) in `out_dtype`."""
    B, N, _ = seed_xyz.shape
    R = vp_rot.reshape(B, N, 3, 3)

    # TODO(synk): this neighbor search is O(N^2) in plain JAX; at production
    # point counts it should be tiled or moved into a scalar-prefetch Pallas
    # gather kernel (selection indices in SMEM + DMA gather).
    rel = seed_xyz[:, None, :, :] - seed_xyz[:, :, None, :]        # (B, P, N, 3)
    # TODO(synk): rotation convention (rel @ R) matches this file's reference;
    # verify against the original CUDA cylinder_query (rel @ R vs R^T @ rel).
    rel_rot = jnp.einsum('bpkj,bpji->bpki', rel, R)
    x_r, y_r, z_r = rel_rot[..., 0], rel_rot[..., 1], rel_rot[..., 2]
    valid = (y_r * y_r + z_r * z_r < radius * radius) & (x_r > hmin) & (x_r < hmax)

    # First `nsample` valid indices in point order via top_k (O(N*ns), no full
    # argsort); keys are unique so order is preserved.  Pad with first hit / 0.
    k_ids = jnp.arange(N, dtype=jnp.int32)
    key = jnp.where(valid, k_ids, N + k_ids)
    _, cand = lax.top_k(-key, nsample)                              # ascending key
    cand = cand.astype(jnp.int32)                                   # (B, P, ns)
    n_valid = valid.sum(axis=-1)                                    # (B, P)
    slot_valid = (jnp.arange(nsample, dtype=jnp.int32)[None, None, :]
                  < n_valid[..., None])
    first = jnp.where(n_valid > 0, cand[..., 0], 0)
    idx = jnp.where(slot_valid, cand, first[..., None])             # (B, P, ns)

    # nsample-outermost gather: transpose the (tiny) index tensor, not the data.
    idx_t = jnp.swapaxes(idx, 1, 2)                                 # (B, ns, P)
    flat_idx = idx_t.reshape(B, nsample * N)

    grouped_xyz = jnp.take_along_axis(seed_xyz, flat_idx[..., None], axis=1)
    grouped_xyz = grouped_xyz.reshape(B, nsample, N, 3)
    grouped_xyz = (grouped_xyz - seed_xyz[:, None, :, :]) / radius  # normalize_xyz
    grouped_xyz = jnp.einsum('bspj,bpji->bspi', grouped_xyz, R)     # rotate_xyz

    feat_t = jnp.swapaxes(seed_feat, 1, 2)                          # (B, P, C)
    grouped_feat = jnp.take_along_axis(feat_t, flat_idx[..., None], axis=1)
    grouped_feat = grouped_feat.reshape(B, nsample, N, -1)

    # use_xyz=True -> concat along channel dim; bf16 for the kernel (activation
    # quantization; f32 accumulation happens inside the kernel).
    return jnp.concatenate([grouped_xyz, grouped_feat], axis=-1).astype(out_dtype)


# ----------------------------------------------------------------------------
# CloudCrop forward
# ----------------------------------------------------------------------------
def make_cloudcrop_params(key, in_dim, hidden=256, eps=1e-5):
    """Deterministic parameter init.  Eval-mode BatchNorm (PyTorch defaults:
    gamma=1, beta=0, running_mean=0, running_var=1) is folded as a scale into
    the conv weights (stored bf16 for the MXU); biases stay f32."""
    # TODO(synk): training-mode BatchNorm (batch statistics) not implemented;
    # eval-mode running-stat BN is folded into the weights instead.
    cin = 3 + in_dim
    k1, k2 = jax.random.split(key)
    scale = 1.0 / (1.0 + eps) ** 0.5
    w1 = jax.random.normal(k1, (cin, hidden), jnp.float32) * (2.0 / cin) ** 0.5
    w2 = jax.random.normal(k2, (hidden, hidden), jnp.float32) * (2.0 / hidden) ** 0.5
    return dict(
        w1=(w1 * scale).astype(jnp.bfloat16),
        b1=jnp.zeros((1, hidden), jnp.float32),
        w2=(w2 * scale).astype(jnp.bfloat16),
        b2=jnp.zeros((1, hidden), jnp.float32),
    )


def cloud_crop_forward(seed_xyz, seed_feat, vp_rot, params, *,
                       nsample, cylinder_radius=0.05, hmin=-0.02, hmax=0.04,
                       tile_m=512):
    grouped = cylinder_query_and_group(
        seed_xyz, seed_feat, vp_rot,
        radius=cylinder_radius, hmin=hmin, hmax=hmax, nsample=nsample)
    out = shared_mlp_maxpool(grouped, params['w1'], params['b1'],
                             params['w2'], params['b2'], tile_m=tile_m)  # (B, P, 256)
    # Back to the PyTorch layout (B, 256, npoint).
    # TODO(synk): if the downstream consumer accepts channels-last, return `out`
    # directly and drop this extra HBM pass.
    return jnp.transpose(out, (0, 2, 1))


# ----------------------------------------------------------------------------
# main
# ----------------------------------------------------------------------------
if __name__ == "__main__":
    B, num_seed, seed_feature_dim, nsample = 2, 64, 32, 16

    key = jax.random.PRNGKey(0)
    k_xyz, k_feat, k_rot, k_par = jax.random.split(key, 4)

    # small point cloud so the 0.05-radius cylinder catches a few neighbors
    seed_xyz = jax.random.uniform(k_xyz, (B, num_seed, 3), jnp.float32) * 0.2
    seed_feat = jax.random.normal(k_feat, (B, seed_feature_dim, num_seed), jnp.float32)
    rnd = jax.random.normal(k_rot, (B, num_seed, 3, 3), jnp.float32)
    q, _ = jnp.linalg.qr(rnd)                                   # proper rotations
    vp_rot = q.reshape(B, num_seed, 9)

    params = make_cloudcrop_params(k_par, seed_feature_dim)

    out = cloud_crop_forward(seed_xyz, seed_feat, vp_rot, params, nsample=nsample)
    out = jax.block_until_ready(out)
    assert out.shape == (B, 256, num_seed), out.shape

    # pure-JAX reference for the MLP + maxpool hot path, using the same bf16
    # grouped input and bf16 inter-layer activation as the kernel.
    grouped = cylinder_query_and_group(
        seed_xyz, seed_feat, vp_rot, radius=0.05, hmin=-0.02, hmax=0.04,
        nsample=nsample)                                        # (B, ns, N, Cin) bf16
    xg = grouped.astype(jnp.float32)
    w1f = params['w1'].astype(jnp.float32)
    w2f = params['w2'].astype(jnp.float32)
    hp = lax.Precision.HIGHEST
    h = jnp.maximum(jnp.einsum('bsnc,ch->bsnh', xg, w1f, precision=hp)
                    + params['b1'][0], 0.0)
    h = h.astype(jnp.bfloat16).astype(jnp.float32)
    h = jnp.maximum(jnp.einsum('bsnh,hk->bsnk', h, w2f, precision=hp)
                    + params['b2'][0], 0.0)
    ref = jnp.transpose(jnp.max(h, axis=1), (0, 2, 1))          # (B, 256, N)

    err = float(jnp.max(jnp.abs(out - ref)))
    assert jnp.allclose(out, ref, atol=5e-2, rtol=5e-2), err

    print("KERNEL_OK")
</pallas_src>

<mosaic_0001>
module attributes {stable_mosaic.version = 11 : i64} {
  func.func @_shared_mlp_maxpool_kernel(%arg0: i32, %arg1: i32, %arg2: i32, %arg3: memref<1x1x64x35xbf16, #tpu.memory_space<vmem>>, %arg4: memref<35x256xbf16, #tpu.memory_space<vmem>>, %arg5: memref<1x256xf32, #tpu.memory_space<vmem>>, %arg6: memref<256x256xbf16, #tpu.memory_space<vmem>>, %arg7: memref<1x256xf32, #tpu.memory_space<vmem>>, %arg8: memref<1x64x256xf32, #tpu.memory_space<vmem>>, %arg9: memref<64x256xf32, #tpu.memory_space<vmem>>) attributes {dimension_semantics = [#tpu.dimension_semantics<parallel>, #tpu.dimension_semantics<parallel>, #tpu.dimension_semantics<arbitrary>], iteration_bounds = array<i64: 2, 1, 16>, scalar_prefetch = 0 : i64, scratch_operands = 1 : i64, tpu.core_type = #tpu.core_type<tc>, window_params = [{transform_indices = @transform_0, window_bounds = array<i64: 1, 1, 64, 35>}, {pipeline_mode = #tpu.pipeline_mode<synchronous>, transform_indices = @transform_1, window_bounds = array<i64: 35, 256>}, {pipeline_mode = #tpu.pipeline_mode<synchronous>, transform_indices = @transform_2, window_bounds = array<i64: 1, 256>}, {pipeline_mode = #tpu.pipeline_mode<synchronous>, transform_indices = @transform_3, window_bounds = array<i64: 256, 256>}, {pipeline_mode = #tpu.pipeline_mode<synchronous>, transform_indices = @transform_4, window_bounds = array<i64: 1, 256>}, {transform_indices = @transform_5, window_bounds = array<i64: 1, 64, 256>}]} {
    %c0 = arith.constant 0 : index
    %c0_0 = arith.constant 0 : index
    %c0_1 = arith.constant 0 : index
    %c0_2 = arith.constant 0 : index
    %0 = vector.load %arg3[%c0, %c0_0, %c0_1, %c0_2] : memref<1x1x64x35xbf16, #tpu.memory_space<vmem>>, vector<1x1x64x35xbf16>
    %1 = vector.shape_cast %0 : vector<1x1x64x35xbf16> to vector<64x35xbf16>
    %c0_3 = arith.constant 0 : index
    %c0_4 = arith.constant 0 : index
    %2 = vector.load %arg4[%c0_3, %c0_4] : memref<35x256xbf16, #tpu.memory_space<vmem>>, vector<35x256xbf16>
    %cst = arith.constant dense<0.000000e+00> : vector<64x256xf32>
    %3 = tpu.matmul %1, %2, %cst {dimension_numbers = #tpu.dot_dimension_numbers<[1], [0], [0], [1], [0, 0, 1, 1], [], []>} : vector<64x35xbf16>, vector<35x256xbf16>, vector<64x256xf32> -> vector<64x256xf32>
    %c0_5 = arith.constant 0 : index
    %c0_6 = arith.constant 0 : index
    %4 = vector.load %arg5[%c0_5, %c0_6] : memref<1x256xf32, #tpu.memory_space<vmem>>, vector<1x256xf32>
    %5 = vector.broadcast %4 : vector<1x256xf32> to vector<64x256xf32>
    %6 = arith.addf %3, %5 : vector<64x256xf32>
    %cst_7 = arith.constant 0.000000e+00 : f32
    %7 = vector.broadcast %cst_7 : f32 to vector<64x256xf32>
    %8 = arith.maximumf %6, %7 : vector<64x256xf32>
    %9 = arith.truncf %8 : vector<64x256xf32> to vector<64x256xbf16>
    %c0_8 = arith.constant 0 : index
    %c0_9 = arith.constant 0 : index
    %10 = vector.load %arg6[%c0_8, %c0_9] : memref<256x256xbf16, #tpu.memory_space<vmem>>, vector<256x256xbf16>
    %cst_10 = arith.constant dense<0.000000e+00> : vector<64x256xf32>
    %11 = tpu.matmul %9, %10, %cst_10 {dimension_numbers = #tpu.dot_dimension_numbers<[1], [0], [0], [1], [0, 0, 1, 1], [], []>} : vector<64x256xbf16>, vector<256x256xbf16>, vector<64x256xf32> -> vector<64x256xf32>
    %c0_11 = arith.constant 0 : index
    %c0_12 = arith.constant 0 : index
    %12 = vector.load %arg7[%c0_11, %c0_12] : memref<1x256xf32, #tpu.memory_space<vmem>>, vector<1x256xf32>
    %13 = vector.broadcast %12 : vector<1x256xf32> to vector<64x256xf32>
    %14 = arith.addf %11, %13 : vector<64x256xf32>
    %cst_13 = arith.constant 0.000000e+00 : f32
    %15 = vector.broadcast %cst_13 : f32 to vector<64x256xf32>
    %16 = arith.maximumf %14, %15 : vector<64x256xf32>
    %c0_i32 = arith.constant 0 : i32
    %17 = arith.cmpi eq, %arg2, %c0_i32 : i32
    %18 = arith.extui %17 : i1 to i32
    %c0_i32_14 = arith.constant 0 : i32
    %19 = arith.cmpi ne, %18, %c0_i32_14 : i32
    scf.if %19 {
      %c0_18 = arith.constant 0 : index
      %c0_19 = arith.constant 0 : index
      %26 = vector.load %arg9[%c0_18, %c0_19] : memref<64x256xf32, #tpu.memory_space<vmem>>, vector<64x256xf32>
      tpu.vector_store %arg9[%c0_18, %c0_19], %16 {strides = array<i32>} : memref<64x256xf32, #tpu.memory_space<vmem>>, vector<64x256xf32>,
    } else {
    }
    %c0_i32_15 = arith.constant 0 : i32
    %20 = arith.cmpi ne, %arg2, %c0_i32_15 : i32
    %21 = arith.extui %20 : i1 to i32
    %c0_i32_16 = arith.constant 0 : i32
    %22 = arith.cmpi ne, %21, %c0_i32_16 : i32
    scf.if %22 {
      %c0_18 = arith.constant 0 : index
      %c0_19 = arith.constant 0 : index
      %26 = vector.load %arg9[%c0_18, %c0_19] : memref<64x256xf32, #tpu.memory_space<vmem>>, vector<64x256xf32>
      %27 = arith.maximumf %26, %16 : vector<64x256xf32>
      %c0_20 = arith.constant 0 : index
      %c0_21 = arith.constant 0 : index
      %28 = vector.load %arg9[%c0_20, %c0_21] : memref<64x256xf32, #tpu.memory_space<vmem>>, vector<64x256xf32>
      tpu.vector_store %arg9[%c0_20, %c0_21], %27 {strides = array<i32>} : memref<64x256xf32, #tpu.memory_space<vmem>>, vector<64x256xf32>,
    } else {
    }
    %c15_i32 = arith.constant 15 : i32
    %23 = arith.cmpi eq, %arg2, %c15_i32 : i32
    %24 = arith.extui %23 : i1 to i32
    %c0_i32_17 = arith.constant 0 : i32
    %25 = arith.cmpi ne, %24, %c0_i32_17 : i32
    scf.if %25 {
      %c0_18 = arith.constant 0 : index
      %c0_19 = arith.constant 0 : index
      %26 = vector.load %arg9[%c0_18, %c0_19] : memref<64x256xf32, #tpu.memory_space<vmem>>, vector<64x256xf32>
      %c0_20 = arith.constant 0 : index
      %c0_21 = arith.constant 0 : index
      %c0_22 = arith.constant 0 : index
      %27 = vector.load %arg8[%c0_20, %c0_21, %c0_22] : memref<1x64x256xf32, #tpu.memory_space<vmem>>, vector<1x64x256xf32>
      %28 = vector.shape_cast %27 : vector<1x64x256xf32> to vector<64x256xf32>
      %29 = vector.shape_cast %26 : vector<64x256xf32> to vector<1x64x256xf32>
      tpu.vector_store %arg8[%c0_20, %c0_21, %c0_22], %29 {strides = array<i32>} : memref<1x64x256xf32, #tpu.memory_space<vmem>>, vector<1x64x256xf32>,
    } else {
    }
    return
  }
  func.func @transform_0(%arg0: i32, %arg1: i32, %arg2: i32) -> (i32, i32, i32, i32) {
    %c0_i32 = arith.constant 0 : i32
    %c0_i32_0 = arith.constant 0 : i32
    return %arg0, %arg2, %arg1, %c0_i32 : i32, i32, i32, i32
  }
  func.func @transform_1(%arg0: i32, %arg1: i32, %arg2: i32) -> (i32, i32) {
    %c0_i32 = arith.constant 0 : i32
    %c0_i32_0 = arith.constant 0 : i32
    %c0_i32_1 = arith.constant 0 : i32
    return %c0_i32, %c0_i32_0 : i32, i32
  }
  func.func @transform_2(%arg0: i32, %arg1: i32, %arg2: i32) -> (i32, i32) {
    %c0_i32 = arith.constant 0 : i32
    %c0_i32_0 = arith.constant 0 : i32
    %c0_i32_1 = arith.constant 0 : i32
    return %c0_i32, %c0_i32_0 : i32, i32
  }
  func.func @transform_3(%arg0: i32, %arg1: i32, %arg2: i32) -> (i32, i32) {
    %c0_i32 = arith.constant 0 : i32
    %c0_i32_0 = arith.constant 0 : i32
    %c0_i32_1 = arith.constant 0 : i32
    return %c0_i32, %c0_i32_0 : i32, i32
  }
  func.func @transform_4(%arg0: i32, %arg1: i32, %arg2: i32) -> (i32, i32) {
    %c0_i32 = arith.constant 0 : i32
    %c0_i32_0 = arith.constant 0 : i32
    %c0_i32_1 = arith.constant 0 : i32
    return %c0_i32, %c0_i32_0 : i32, i32
  }
  func.func @transform_5(%arg0: i32, %arg1: i32, %arg2: i32) -> (i32, i32, i32) {
    %c0_i32 = arith.constant 0 : i32
    %c0_i32_0 = arith.constant 0 : i32
    return %arg0, %arg1, %c0_i32 : i32, i32, i32
  }
}

</mosaic_0001>

<llo_original>
// kernel: tpu_custom_call.1
$region0: #{tpu_custom_call.1}
  #allocation0 [shape = 'u32[]', space=smem, size = 0x4, offset = 0x4, fixed_abs, tag = 'smem constant byte address 0x4 - core index']
  #allocation1 [shape = 'u32[144,128]{1,0:T(1,128)}', space=vmem, size = 0x12000, scoped, tag = 'internal scratch']
  #allocation2 [shape = 'f32[64,256]{1,0:T(8,128)}', space=vmem, size = 0x10000, scoped, tag = 'scratch operand']
  %s0 = inlined_call_operand.vmem [shape: bf16[2,16,64,35], index: 0, kind: input, shape index: {}]
  %s1 = inlined_call_operand.vmem [shape: bf16[35,256], index: 1, kind: input, shape index: {}]
  %s2 = inlined_call_operand.vmem [shape: f32[1,256], index: 2, kind: input, shape index: {}]
  %s3 = inlined_call_operand.vmem [shape: bf16[256,256], index: 3, kind: input, shape index: {}]
  %s4 = inlined_call_operand.vmem [shape: f32[1,256], index: 4, kind: input, shape index: {}]
  %s5 = inlined_call_operand.hbm [shape: f32[2,64,256], index: 5, kind: output, shape index: {}]
  %s6 = sld [smem:[#allocation0]]
  $region65: #{tpu_custom_call.1} parent=0
    _
  %s8 = ssub.s32 1, %s6
  %s9 = scalar_select 0, %s8, %s6
  $region1: #{tpu_custom_call.1} parent=0
    #allocation3 [shape = 'u8[131072]{0}', space=vmem, size = 0x20000, scoped, tag = 'output window, operand 0']
    #allocation4 [shape = 's32[2]{0}', space=sflag, size = 0x8, scoped, tag = 'scoped memory for tpu_custom_call.1']
    %10 = vsyncpa [#allocation4], 0
    %s11 = scalar_lea.sflag [#allocation4], 1
    %12 = vsyncpa %s11, 0
    loop: start=0, step=1, limit=34
    $region2: #{tpu_custom_call.1} parent=1 // loop_pre_header
      _
    $region3: #{tpu_custom_call.1} parent=1 // loop_header
      %s14 = sphi 0, %s18
      %p15 = scmp.ge.s32.totalorder %s14, 34
      %s21 = sphi 0, %s40
      %s22 = sphi 0, %s36
      %s23 = sphi 0, %s32
      %s24 = sphi 0, %s21
      %s25 = sphi 0, %s22
      %s26 = sphi 0, %s23
      %s27 = sphi 0, %s24
      %s28 = sphi 0, %s25
      %s29 = sphi 0, %s26
      %s47 = sphi 0, %s49
      %s50 = sphi 0, %s47
      %s51 = sphi 0, %s50
      %s67 = sphi 0, %s51
      %s71 = sphi 0, %s71
      %s73 = sphi 0, %s71
      %s74 = sphi 0, %s73
      %s88 = sphi 0, %s74
      %s92 = sphi 0, %s92
      %s94 = sphi 0, %s92
      %s95 = sphi 0, %s94
      %s109 = sphi 0, %s95
      %s113 = sphi 0, %s113
      %s115 = sphi 0, %s113
      %s116 = sphi 0, %s115
      %s130 = sphi 0, %s116
      %s134 = sphi 0, %s134
      %s136 = sphi 0, %s134
      %s137 = sphi 0, %s136
      %s151 = sphi 0, %s137
      %s159 = sphi 0, %s161
      %s162 = sphi 0, %s159
      %s163 = sphi 0, %s162
      %s179 = sphi 0, %s163
    $region4: #{tpu_custom_call.1} parent=1 // loop_header_branch
      %17 = sbr.rel (%p15) target = $region8
    $region5: #{tpu_custom_call.1} parent=1 // loop_body
      %s19 = ssub.s32 %s14, 1
      %s20 = ssub.s32 %s14, 2
      %s30 = sadd.s32 1, %s23
      %p31 = scmp.ge.s32.totalorder %s30, 16
      %s32 = scalar_select %p31, 0, %s30
      %s33 = sadd.s32 1, %s22
      %s34 = scalar_select %p31, %s33, %s22
      %p35 = scmp.ge.s32.totalorder %s34, 1
      %s36 = scalar_select %p35, 0, %s34
      %s37 = sadd.s32 1, %s21
      %s38 = scalar_select %p35, %s37, %s21
      %p39 = scmp.ge.s32.totalorder %s38, 2
      %s40 = scalar_select %p39, 0, %s38
      %s41 = ssub.s32 %s21, %s40
      %s42 = ssub.s32 %s23, %s32
      %s43 = sor.u32 %s41, %s42
      %s44 = ssub.s32 %s22, %s36
      %s45 = sor.u32 %s43, %s44
      %p46 = scmp.eq.s32.totalorder %s45, 0
      %s48 = sadd.s32 %s47, 1
      %s49 = scalar_select %p46, %s47, %s48
      %p52 = pneg %p46
      %p53 = scmp.eq.s32.totalorder %s14, 31
      %p54 = por %p52, %p53
      %p55 = scmp.ne.s32.totalorder %s47, %s50
      %p56 = scmp.eq.s32.totalorder %s14, 0
      %p57 = por %p55, %p56
      %p58 = scmp.ne.s32.totalorder %s47, %s50
      %p59 = scmp.eq.s32.totalorder %s19, 31
      %p60 = por %p58, %p59
      %p61 = scmp.ne.s32.totalorder %s50, %s51
      %p62 = scmp.eq.s32.totalorder %s19, 0
      %p63 = por %p61, %p62
      %p64 = scmp.ne.s32.totalorder %s50, %s51
      %p65 = scmp.eq.s32.totalorder %s20, 31
      %p66 = por %p64, %p65
      %p68 = scmp.ne.s32.totalorder %s51, %s67
      %p69 = scmp.eq.s32.totalorder %s20, 0
      %p70 = por %p68, %p69
      %s72 = sadd.s32 %s71, 1
      %p75 = scmp.eq.s32.totalorder %s14, 31
      %p76 = scmp.ne.s32.totalorder %s71, %s73
      %p77 = scmp.eq.s32.totalorder %s14, 0
      %p78 = por %p76, %p77
      %p79 = scmp.ne.s32.totalorder %s71, %s73
      %p80 = scmp.eq.s32.totalorder %s19, 31
      %p81 = por %p79, %p80
      %p82 = scmp.ne.s32.totalorder %s73, %s74
      %p83 = scmp.eq.s32.totalorder %s19, 0
      %p84 = por %p82, %p83
      %p85 = scmp.ne.s32.totalorder %s73, %s74
      %p86 = scmp.eq.s32.totalorder %s20, 31
      %p87 = por %p85, %p86
      %p89 = scmp.ne.s32.totalorder %s74, %s88
      %p90 = scmp.eq.s32.totalorder %s20, 0
      %p91 = por %p89, %p90
      %s93 = sadd.s32 %s92, 1
      %p96 = scmp.eq.s32.totalorder %s14, 31
      %p97 = scmp.ne.s32.totalorder %s92, %s94
      %p98 = scmp.eq.s32.totalorder %s14, 0
      %p99 = por %p97, %p98
      %p100 = scmp.ne.s32.totalorder %s92, %s94
      %p101 = scmp.eq.s32.totalorder %s19, 31
      %p102 = por %p100, %p101
      %p103 = scmp.ne.s32.totalorder %s94, %s95
      %p104 = scmp.eq.s32.totalorder %s19, 0
      %p105 = por %p103, %p104
      %p106 = scmp.ne.s32.totalorder %s94, %s95
      %p107 = scmp.eq.s32.totalorder %s20, 31
      %p108 = por %p106, %p107
      %p110 = scmp.ne.s32.totalorder %s95, %s109
      %p111 = scmp.eq.s32.totalorder %s20, 0
      %p112 = por %p110, %p111
      %s114 = sadd.s32 %s113, 1
      %p117 = scmp.eq.s32.totalorder %s14, 31
      %p118 = scmp.ne.s32.totalorder %s113, %s115
      %p119 = scmp.eq.s32.totalorder %s14, 0
      %p120 = por %p118, %p119
      %p121 = scmp.ne.s32.totalorder %s113, %s115
      %p122 = scmp.eq.s32.totalorder %s19, 31
      %p123 = por %p121, %p122
      %p124 = scmp.ne.s32.totalorder %s115, %s116
      %p125 = scmp.eq.s32.totalorder %s19, 0
      %p126 = por %p124, %p125
      %p127 = scmp.ne.s32.totalorder %s115, %s116
      %p128 = scmp.eq.s32.totalorder %s20, 31
      %p129 = por %p127, %p128
      %p131 = scmp.ne.s32.totalorder %s116, %s130
      %p132 = scmp.eq.s32.totalorder %s20, 0
      %p133 = por %p131, %p132
      %s135 = sadd.s32 %s134, 1
      %p138 = scmp.eq.s32.totalorder %s14, 31
      %p139 = scmp.ne.s32.totalorder %s134, %s136
      %p140 = scmp.eq.s32.totalorder %s14, 0
      %p141 = por %p139, %p140
      %p142 = scmp.ne.s32.totalorder %s134, %s136
      %p143 = scmp.eq.s32.totalorder %s19, 31
      %p144 = por %p142, %p143
      %p145 = scmp.ne.s32.totalorder %s136, %s137
      %p146 = scmp.eq.s32.totalorder %s19, 0
      %p147 = por %p145, %p146
      %p148 = scmp.ne.s32.totalorder %s136, %s137
      %p149 = scmp.eq.s32.totalorder %s20, 31
      %p150 = por %p148, %p149
      %p152 = scmp.ne.s32.totalorder %s137, %s151
      %p153 = scmp.eq.s32.totalorder %s20, 0
      %p154 = por %p152, %p153
      %s155 = ssub.s32 %s21, %s40
      %s156 = ssub.s32 %s22, %s36
      %s157 = sor.u32 %s155, %s156
      %p158 = scmp.eq.s32.totalorder %s157, 0
      %s160 = sadd.s32 %s159, 1
      %s161 = scalar_select %p158, %s159, %s160
      %p164 = pneg %p158
      %p165 = scmp.eq.s32.totalorder %s14, 31
      %p166 = por %p164, %p165
      %p167 = scmp.ne.s32.totalorder %s159, %s162
      %p168 = scmp.eq.s32.totalorder %s14, 0
      %p169 = por %p167, %p168
      %p170 = scmp.ne.s32.totalorder %s159, %s162
      %p171 = scmp.eq.s32.totalorder %s19, 31
      %p172 = por %p170, %p171
      %p173 = scmp.ne.s32.totalorder %s162, %s163
      %p174 = scmp.eq.s32.totalorder %s19, 0
      %p175 = por %p173, %p174
      %p176 = scmp.ne.s32.totalorder %s162, %s163
      %p177 = scmp.eq.s32.totalorder %s20, 31
      %p178 = por %p176, %p177
      %p180 = scmp.ne.s32.totalorder %s163, %s179
      %p181 = scmp.eq.s32.totalorder %s20, 0
      %p182 = por %p180, %p181
      %p183 = scmp.le.s32.totalorder 1, %s14
      %p184 = scmp.lt.s32.totalorder %s14, 33
      %p185 = pnand %p183, %p184
      %p186 = pneg %p185
      // Predicated region
      $region9: #{tpu_custom_call.1} parent=5 // pred_check
        _
      $region10: #{tpu_custom_call.1} parent=5 // pred_check_branch
        %188 = sbr.rel (%p185) target = $region12
      $region11: #{tpu_custom_call.1} parent=5 // pred_region
        %s189 = ssub.s32 %s14, 1
        // Predicated region
        $region13: #{tpu_custom_call.1} parent=11 // pred_check
          %p190 = pneg %p84
        $region14: #{tpu_custom_call.1} parent=11 // pred_check_branch
          %192 = sbr.rel (%p190) target = $region16
        $region15: #{tpu_custom_call.1} parent=11 // pred_region
          _
        $region16: #{tpu_custom_call.1} parent=11 // pred_fallthru
          _
        // Predicated region
        $region17: #{tpu_custom_call.1} parent=11 // pred_check
          %p193 = pneg %p105
        $region18: #{tpu_custom_call.1} parent=11 // pred_check_branch
          %195 = sbr.rel (%p193) target = $region20
        $region19: #{tpu_custom_call.1} parent=11 // pred_region
          _
        $region20: #{tpu_custom_call.1} parent=11 // pred_fallthru
          _
        // Predicated region
        $region21: #{tpu_custom_call.1} parent=11 // pred_check
          %p196 = pneg %p126
        $region22: #{tpu_custom_call.1} parent=11 // pred_check_branch
          %198 = sbr.rel (%p196) target = $region24
        $region23: #{tpu_custom_call.1} parent=11 // pred_region
          _
        $region24: #{tpu_custom_call.1} parent=11 // pred_fallthru
          _
        // Predicated region
        $region25: #{tpu_custom_call.1} parent=11 // pred_check
          %p199 = pneg %p147
        $region26: #{tpu_custom_call.1} parent=11 // pred_check_branch
          %201 = sbr.rel (%p199) target = $region28
        $region27: #{tpu_custom_call.1} parent=11 // pred_region
          _
        $region28: #{tpu_custom_call.1} parent=11 // pred_fallthru
          _
      $region12: #{tpu_custom_call.1} parent=5 // pred_fallthru
        _
      %p202 = scmp.lt.s32.totalorder %s14, 32
      // Predicated region
      $region29: #{tpu_custom_call.1} parent=5 // pred_check
        %p203 = pneg %p202
      $region30: #{tpu_custom_call.1} parent=5 // pred_check_branch
        %205 = sbr.rel (%p203) target = $region32
      $region31: #{tpu_custom_call.1} parent=5 // pred_region
        // Predicated region
        $region33: #{tpu_custom_call.1} parent=31 // pred_check
          %p206 = pneg %p57
        $region34: #{tpu_custom_call.1} parent=31 // pred_check_branch
          %208 = sbr.rel (%p206) target = $region36
        $region35: #{tpu_custom_call.1} parent=31 // pred_region
          %s209 = smul.u32 8, %s22
          %p210 = scmp.lt.s32.totalorder %s21, 1
          %s211 = scalar_select %p210, %s21, 1
          %p212 = scmp.lt.s32.totalorder %s23, 15
          %s213 = scalar_select %p212, %s23, 15
          %p214 = scmp.lt.s32.totalorder %s209, 7
          %s215 = scalar_select %p214, %s209, 7
          %s216 = smul.addr %s213, 8
          %s217 = sadd.s32 %s215, %s216
          %s218 = smul.addr %s211, 128
          %s219 = sadd.s32 %s217, %s218
          %s220 = smul.addr %s219, 4
          %s221 = scalar_lea.vmem %s0, %s220
          %s222 = smul.u32 8, %s22
        $region36: #{tpu_custom_call.1} parent=31 // pred_fallthru
          _
      $region32: #{tpu_custom_call.1} parent=5 // pred_fallthru
        _
      %p223 = scmp.le.s32.totalorder 1, %s14
      %p224 = scmp.lt.s32.totalorder %s14, 33
      %p225 = pnand %p223, %p224
      %p226 = pneg %p225
      // Predicated region
      $region37: #{tpu_custom_call.1} parent=5 // pred_check
        _
      $region38: #{tpu_custom_call.1} parent=5 // pred_check_branch
        %228 = sbr.rel (%p225) target = $region40
      $region39: #{tpu_custom_call.1} parent=5 // pred_region
        %s229 = ssub.s32 %s14, 1
        %s230 = smul.u32 8, %s25
        %p231 = scmp.lt.s32.totalorder %s24, 1
        %s232 = scalar_select %p231, %s24, 1
        %p233 = scmp.lt.s32.totalorder %s26, 15
        %s234 = scalar_select %p233, %s26, 15
        %p235 = scmp.lt.s32.totalorder %s230, 7
        %s236 = scalar_select %p235, %s230, 7
        %s237 = smul.addr %s234, 8
        %s238 = sadd.s32 %s236, %s237
        %s239 = smul.addr %s232, 128
        %s240 = sadd.s32 %s238, %s239
        %s241 = smul.addr %s240, 4
        %s242 = scalar_lea.vmem %s0, %s241
        %p243 = pneg %p63
        %p244 = pneg %p60
        %p245 = pneg %p84
        %p246 = pneg %p81
        %p247 = pneg %p105
        %p248 = pneg %p102
        %p249 = pneg %p126
        %p250 = pneg %p123
        %p251 = pneg %p147
        %p252 = pneg %p144
        %p253 = pneg %p175
        %p254 = pneg %p172
        %s255 = sand.u32 %s162, 1
        %s256 = scalar_lea.sflag [#allocation4], %s255
        %s257 = sand.u32 %s162, 1
        %s258 = smul.addr %s257, 128
        %s259 = scalar_lea.vmem [#allocation3], %s258
        %s260 = smul.u32 8, %s25
        %p261 = scmp.lt.s32.totalorder %s24, 1
        %s262 = scalar_select %p261, %s24, 1
        %p263 = scmp.lt.s32.totalorder %s26, 15
        %s264 = scalar_select %p263, %s26, 15
        %p265 = scmp.lt.s32.totalorder %s260, 7
        %s266 = scalar_select %p265, %s260, 7
        %s267 = smul.addr %s264, 8
        %s268 = sadd.s32 %s266, %s267
        %s269 = smul.addr %s262, 128
        %s270 = sadd.s32 %s268, %s269
        %s271 = smul.addr %s270, 4
        %s272 = scalar_lea.vmem %s0, %s271
        %s273 = smul.u32 8, %s25
        %s274 = smul.u32 8, %s25
        %v276 = vld [vmem:[%s272] sm:$0xf]
        %v277 = vld [vmem:[%s272 + $0x4] sm:$0xf]
        %v278 = vld [vmem:[%s272 + $0x8] sm:$0xf]
        %v279 = vld [vmem:[%s272 + $0xc] sm:$0xf]
        %v280 = vld [vmem:[%s272 + $0x10] sm:$0xf]
        %v281 = vld [vmem:[%s272 + $0x14] sm:$0xf]
        %v282 = vld [vmem:[%s272 + $0x18] sm:$0xf]
        %v283 = vld [vmem:[%s272 + $0x1c] sm:$0xf]
        %v284 = vld [vmem:[%s1] sm:$0xff]
        %v285 = vld [vmem:[%s1 + $0x8] sm:$0xff]
        %v286 = vld [vmem:[%s1 + $0x10] sm:$0xff]
        %v287 = vld [vmem:[%s1 + $0x18] sm:$0xff]
        %v288 = vld [vmem:[%s1 + $0x20] sm:$0x33]
        %v289 = vld [vmem:[%s2] sm:$0x3]
        %v291 = vlaneseq
        %v292 = vshrl.u32 %v291, 7
        %v293 = vsub.s32 0, %v292
        %v294 = vrot.slane %v289, %v293
        %v295 = vlaneseq
        %v296 = vshrl.u32 %v295, 7
        %v297 = vsub.s32 1, %v296
        %v298 = vrot.slane %v289, %v297
        %v309 = vunpack.c.l.b16 %v276
        %v310 = vunpack.c.l.b16 %v277
        %v311 = vunpack.c.l.b16 %v278
        %v312 = vunpack.c.l.b16 %v279
        %v313 = vunpack.c.l.b16 %v280
        %v314 = vunpack.c.l.b16 %v281
        %v315 = vunpack.c.l.b16 %v282
        %v316 = vunpack.c.l.b16 %v283
        %v317 = vpack.c.b16 %v310, %v309
        %v318 = vpack.c.b16 %v312, %v311
        %v319 = vpack.c.b16 %v314, %v313
        %v320 = vpack.c.b16 %v316, %v315
        %v326 = vunpack.c.l.b16 %v284
        %v327 = vunpack.c.h.b16 %v284
        %v328 = vunpack.c.l.b16 %v285
        %v329 = vunpack.c.h.b16 %v285
        %v330 = vunpack.c.l.b16 %v286
        %v331 = vunpack.c.h.b16 %v286
        %v332 = vunpack.c.l.b16 %v287
        %v333 = vunpack.c.h.b16 %v287
        %v334 = vunpack.c.l.b16 %v288
        %v335 = vunpack.c.h.b16 %v288
        %v336 = vpack.c.b16 %v328, %v326
        %v337 = vpack.c.b16 %v329, %v327
        %v338 = vpack.c.b16 %v332, %v330
        %v339 = vpack.c.b16 %v333, %v331
        %v340 = vpack.c.b16 %v334, %v334
        %v341 = vpack.c.b16 %v335, %v335
        %vm346 = vcmask 285696
        %v348 = vsel %vm346, %v317, 0
        %v351 = vsel %vm346, %v318, 0
        %v354 = vsel %vm346, %v319, 0
        %v357 = vsel %vm346, %v320, 0
        %vm359 = vcmask 1040384
        %vm360 = vcmask 1041408
        %v361 = vsel %vm359, 4294967295, 65535
        %v362 = vsel %vm360, %v361, 0
        %v364 = vand.u32 %v340, %v362
        %v367 = vand.u32 %v341, %v362
        %369 = vmatprep.subr.bf16.mxu0 0
        %370 = vmatpush1.bf16.msra.mxu0 0
        %371 = vmatprep.subr.bf16.mxu0 0
        %372 = vmatpush1.bf16.msra.mxu0 0
        %373 = vmatprep.subr.bf16.mxu0 0
        %374 = vmatpush1.bf16.msra.mxu0 0
        %375 = vmatprep.subr.bf16.mxu0 0
        %376 = vmatpush1.bf16.msra.mxu0 0
        %377 = vmatprep.subr.bf16.mxu0 0
        %378 = vmatpush1.bf16.msra.mxu0 0
        %379 = vmatprep.subr.bf16.mxu0 %v367
        %380 = vmatpush1.bf16.msra.mxu0 %v364
        %381 = vmatprep.subr.bf16.mxu0 %v339
        %382 = vmatpush1.bf16.msra.mxu0 %v338
        %383 = vmatprep.subr.bf16.mxu0 %v337
        %384 = vmatpush1.bf16.msra.mxu0 %v336
        %385 = vmatprep.subr.bf16.mxu0 0
        %386 = vmatpush2.bf16.msra.mxu0 0
        %387 = vmatprep.subr.bf16.mxu0 0
        %388 = vmatpush2.bf16.msra.mxu0 0
        %389 = vmatprep.subr.bf16.mxu0 0
        %390 = vmatpush2.bf16.msra.mxu0 0
        %391 = vmatprep.subr.bf16.mxu0 0
        %392 = vmatpush2.bf16.msra.mxu0 0
        %393 = vmatprep.subr.bf16.mxu0 0
        %394 = vmatpush2.bf16.msra.mxu0 0
        %395 = vmatprep.subr.bf16.mxu0 0
        %396 = vmatpush2.bf16.msra.mxu0 0
        %397 = vmatprep.subr.bf16.mxu0 0
        %398 = vmatpush2.bf16.msra.mxu0 0
        %399 = vmatprep.subr.bf16.mxu0 0
        %400 = vmatpush2.bf16.msra.mxu0 0
        %401 = vmatprep.mubr.bf16.mxu0 0
        %402 = vmatmul.mubr.bf16.gmra.mxu0 %v348
        %v403 = vpop.f32.mrf.mxu0
        %v404 = vadd.f32 %v294, %v403
        %v405 = vpop.f32.mrf.mxu0
        %v406 = vadd.f32 %v298, %v405
        %v407 = vpop.f32.mrf.mxu0
        %v408 = vadd.f32 %v294, %v407
        %v409 = vpop.f32.mrf.mxu0
        %v410 = vadd.f32 %v298, %v409
        %411 = vmatprep.mubr.bf16.mxu0 0
        %412 = vmatmul.mubr.bf16.gmra.mxu0 %v351
        %v413 = vpop.f32.mrf.mxu0
        %v414 = vadd.f32 %v294, %v413
        %v415 = vpop.f32.mrf.mxu0
        %v416 = vadd.f32 %v298, %v415
        %v417 = vpop.f32.mrf.mxu0
        %v418 = vadd.f32 %v294, %v417
        %v419 = vpop.f32.mrf.mxu0
        %v420 = vadd.f32 %v298, %v419
        %421 = vmatprep.mubr.bf16.mxu0 0
        %422 = vmatmul.mubr.bf16.gmra.mxu0 %v354
        %v423 = vpop.f32.mrf.mxu0
        %v424 = vadd.f32 %v294, %v423
        %v425 = vpop.f32.mrf.mxu0
        %v426 = vadd.f32 %v298, %v425
        %v427 = vpop.f32.mrf.mxu0
        %v428 = vadd.f32 %v294, %v427
        %v429 = vpop.f32.mrf.mxu0
        %v430 = vadd.f32 %v298, %v429
        %431 = vmatprep.mubr.bf16.mxu0 0
        %432 = vmatmul.mubr.bf16.gmra.mxu0 %v357
        %v433 = vpop.f32.mrf.mxu0
        %v434 = vadd.f32 %v294, %v433
        %v435 = vpop.f32.mrf.mxu0
        %v436 = vadd.f32 %v298, %v435
        %v437 = vpop.f32.mrf.mxu0
        %v438 = vadd.f32 %v294, %v437
        %v439 = vpop.f32.mrf.mxu0
        %v440 = vadd.f32 %v298, %v439
        %441 = vdwg.mxu0
        %v442 = vmax.f32 %v404, 0.0
        %v443 = vmax.f32 %v406, 0.0
        %v444 = vmax.f32 %v408, 0.0
        %v445 = vmax.f32 %v410, 0.0
        %v446 = vmax.f32 %v414, 0.0
        %v447 = vmax.f32 %v416, 0.0
        %v448 = vmax.f32 %v418, 0.0
        %v449 = vmax.f32 %v420, 0.0
        %v450 = vmax.f32 %v424, 0.0
        %v451 = vmax.f32 %v426, 0.0
        %v452 = vmax.f32 %v428, 0.0
        %v453 = vmax.f32 %v430, 0.0
        %v454 = vmax.f32 %v434, 0.0
        %v455 = vmax.f32 %v436, 0.0
        %v456 = vmax.f32 %v438, 0.0
        %v457 = vmax.f32 %v440, 0.0
        %v458 = vpack.c.bf16 %v444, %v442
        %v459 = vpack.c.bf16 %v445, %v443
        %v460 = vpack.c.bf16 %v448, %v446
        %v461 = vpack.c.bf16 %v449, %v447
        %v462 = vpack.c.bf16 %v452, %v450
        %v463 = vpack.c.bf16 %v453, %v451
        %v464 = vpack.c.bf16 %v456, %v454
        %v465 = vpack.c.bf16 %v457, %v455
        %v466 = vld [vmem:[%s3] sm:$0xff]
        %v467 = vld [vmem:[%s3 + $0x8] sm:$0xff]
        %v468 = vld [vmem:[%s3 + $0x10] sm:$0xff]
        %v469 = vld [vmem:[%s3 + $0x18] sm:$0xff]
        %v470 = vld [vmem:[%s3 + $0x20] sm:$0xff]
        %v471 = vld [vmem:[%s3 + $0x28] sm:$0xff]
        %v472 = vld [vmem:[%s3 + $0x30] sm:$0xff]
        %v473 = vld [vmem:[%s3 + $0x38] sm:$0xff]
        %v474 = vld [vmem:[%s3 + $0x40] sm:$0xff]
        %v475 = vld [vmem:[%s3 + $0x48] sm:$0xff]
        %v476 = vld [vmem:[%s3 + $0x50] sm:$0xff]
        %v477 = vld [vmem:[%s3 + $0x58] sm:$0xff]
        %v478 = vld [vmem:[%s3 + $0x60] sm:$0xff]
        %v479 = vld [vmem:[%s3 + $0x68] sm:$0xff]
        %v480 = vld [vmem:[%s3 + $0x70] sm:$0xff]
        %v481 = vld [vmem:[%s3 + $0x78] sm:$0xff]
        %v482 = vld [vmem:[%s3 + $0x80] sm:$0xff]
        %v483 = vld [vmem:[%s3 + $0x88] sm:$0xff]
        %v484 = vld [vmem:[%s3 + $0x90] sm:$0xff]
        %v485 = vld [vmem:[%s3 + $0x98] sm:$0xff]
        %v486 = vld [vmem:[%s3 + $0xa0] sm:$0xff]
        %v487 = vld [vmem:[%s3 + $0xa8] sm:$0xff]
        %v488 = vld [vmem:[%s3 + $0xb0] sm:$0xff]
        %v489 = vld [vmem:[%s3 + $0xb8] sm:$0xff]
        %v490 = vld [vmem:[%s3 + $0xc0] sm:$0xff]
        %v491 = vld [vmem:[%s3 + $0xc8] sm:$0xff]
        %v492 = vld [vmem:[%s3 + $0xd0] sm:$0xff]
        %v493 = vld [vmem:[%s3 + $0xd8] sm:$0xff]
        %v494 = vld [vmem:[%s3 + $0xe0] sm:$0xff]
        %v495 = vld [vmem:[%s3 + $0xe8] sm:$0xff]
        %v496 = vld [vmem:[%s3 + $0xf0] sm:$0xff]
        %v497 = vld [vmem:[%s3 + $0xf8] sm:$0xff]
        %v498 = vld [vmem:[%s4] sm:$0x3]
        %v500 = vlaneseq
        %v501 = vshrl.u32 %v500, 7
        %v502 = vsub.s32 0, %v501
        %v503 = vrot.slane %v498, %v502
        %v504 = vlaneseq
        %v505 = vshrl.u32 %v504, 7
        %v506 = vsub.s32 1, %v505
        %v507 = vrot.slane %v498, %v506
        %v542 = vunpack.c.l.b16 %v466
        %v543 = vunpack.c.h.b16 %v466
        %v544 = vunpack.c.l.b16 %v467
        %v545 = vunpack.c.h.b16 %v467
        %v546 = vunpack.c.l.b16 %v468
        %v547 = vunpack.c.h.b16 %v468
        %v548 = vunpack.c.l.b16 %v469
        %v549 = vunpack.c.h.b16 %v469
        %v550 = vunpack.c.l.b16 %v470
        %v551 = vunpack.c.h.b16 %v470
        %v552 = vunpack.c.l.b16 %v471
        %v553 = vunpack.c.h.b16 %v471
        %v554 = vunpack.c.l.b16 %v472
        %v555 = vunpack.c.h.b16 %v472
        %v556 = vunpack.c.l.b16 %v473
        %v557 = vunpack.c.h.b16 %v473
        %v558 = vunpack.c.l.b16 %v474
        %v559 = vunpack.c.h.b16 %v474
        %v560 = vunpack.c.l.b16 %v475
        %v561 = vunpack.c.h.b16 %v475
        %v562 = vunpack.c.l.b16 %v476
        %v563 = vunpack.c.h.b16 %v476
        %v564 = vunpack.c.l.b16 %v477
        %v565 = vunpack.c.h.b16 %v477
        %v566 = vunpack.c.l.b16 %v478
        %v567 = vunpack.c.h.b16 %v478
        %v568 = vunpack.c.l.b16 %v479
        %v569 = vunpack.c.h.b16 %v479
        %v570 = vunpack.c.l.b16 %v480
        %v571 = vunpack.c.h.b16 %v480
        %v572 = vunpack.c.l.b16 %v481
        %v573 = vunpack.c.h.b16 %v481
        %v574 = vunpack.c.l.b16 %v482
        %v575 = vunpack.c.h.b16 %v482
        %v576 = vunpack.c.l.b16 %v483
        %v577 = vunpack.c.h.b16 %v483
        %v578 = vunpack.c.l.b16 %v484
        %v579 = vunpack.c.h.b16 %v484
        %v580 = vunpack.c.l.b16 %v485
        %v581 = vunpack.c.h.b16 %v485
        %v582 = vunpack.c.l.b16 %v486
        %v583 = vunpack.c.h.b16 %v486
        %v584 = vunpack.c.l.b16 %v487
        %v585 = vunpack.c.h.b16 %v487
        %v586 = vunpack.c.l.b16 %v488
        %v587 = vunpack.c.h.b16 %v488
        %v588 = vunpack.c.l.b16 %v489
        %v589 = vunpack.c.h.b16 %v489
        %v590 = vunpack.c.l.b16 %v490
        %v591 = vunpack.c.h.b16 %v490
        %v592 = vunpack.c.l.b16 %v491
        %v593 = vunpack.c.h.b16 %v491
        %v594 = vunpack.c.l.b16 %v492
        %v595 = vunpack.c.h.b16 %v492
        %v596 = vunpack.c.l.b16 %v493
        %v597 = vunpack.c.h.b16 %v493
        %v598 = vunpack.c.l.b16 %v494
        %v599 = vunpack.c.h.b16 %v494
        %v600 = vunpack.c.l.b16 %v495
        %v601 = vunpack.c.h.b16 %v495
        %v602 = vunpack.c.l.b16 %v496
        %v603 = vunpack.c.h.b16 %v496
        %v604 = vunpack.c.l.b16 %v497
        %v605 = vunpack.c.h.b16 %v497
        %v606 = vpack.c.b16 %v544, %v542
        %v607 = vpack.c.b16 %v545, %v543
        %v608 = vpack.c.b16 %v548, %v546
        %v609 = vpack.c.b16 %v549, %v547
        %v610 = vpack.c.b16 %v552, %v550
        %v611 = vpack.c.b16 %v553, %v551
        %v612 = vpack.c.b16 %v556, %v554
        %v613 = vpack.c.b16 %v557, %v555
        %v614 = vpack.c.b16 %v560, %v558
        %v615 = vpack.c.b16 %v561, %v559
        %v616 = vpack.c.b16 %v564, %v562
        %v617 = vpack.c.b16 %v565, %v563
        %v618 = vpack.c.b16 %v568, %v566
        %v619 = vpack.c.b16 %v569, %v567
        %v620 = vpack.c.b16 %v572, %v570
        %v621 = vpack.c.b16 %v573, %v571
        %v622 = vpack.c.b16 %v576, %v574
        %v623 = vpack.c.b16 %v577, %v575
        %v624 = vpack.c.b16 %v580, %v578
        %v625 = vpack.c.b16 %v581, %v579
        %v626 = vpack.c.b16 %v584, %v582
        %v627 = vpack.c.b16 %v585, %v583
        %v628 = vpack.c.b16 %v588, %v586
        %v629 = vpack.c.b16 %v589, %v587
        %v630 = vpack.c.b16 %v592, %v590
        %v631 = vpack.c.b16 %v593, %v591
        %v632 = vpack.c.b16 %v596, %v594
        %v633 = vpack.c.b16 %v597, %v595
        %v634 = vpack.c.b16 %v600, %v598
        %v635 = vpack.c.b16 %v601, %v599
        %v636 = vpack.c.b16 %v604, %v602
        %v637 = vpack.c.b16 %v605, %v603
        %670 = vmatprep.subr.bf16.mxu0 %v621
        %671 = vmatpush1.bf16.msra.mxu0 %v620
        %672 = vmatprep.subr.bf16.mxu0 %v619
        %673 = vmatpush1.bf16.msra.mxu0 %v618
        %674 = vmatprep.subr.bf16.mxu0 %v617
        %675 = vmatpush1.bf16.msra.mxu0 %v616
        %676 = vmatprep.subr.bf16.mxu0 %v615
        %677 = vmatpush1.bf16.msra.mxu0 %v614
        %678 = vmatprep.subr.bf16.mxu0 %v613
        %679 = vmatpush1.bf16.msra.mxu0 %v612
        %680 = vmatprep.subr.bf16.mxu0 %v611
        %681 = vmatpush1.bf16.msra.mxu0 %v610
        %682 = vmatprep.subr.bf16.mxu0 %v609
        %683 = vmatpush1.bf16.msra.mxu0 %v608
        %684 = vmatprep.subr.bf16.mxu0 %v607
        %685 = vmatpush1.bf16.msra.mxu0 %v606
        %686 = vmatprep.subr.bf16.mxu0 %v637
        %687 = vmatpush2.bf16.msra.mxu0 %v636
        %688 = vmatprep.subr.bf16.mxu0 %v635
        %689 = vmatpush2.bf16.msra.mxu0 %v634
        %690 = vmatprep.subr.bf16.mxu0 %v633
        %691 = vmatpush2.bf16.msra.mxu0 %v632
        %692 = vmatprep.subr.bf16.mxu0 %v631
        %693 = vmatpush2.bf16.msra.mxu0 %v630
        %694 = vmatprep.subr.bf16.mxu0 %v629
        %695 = vmatpush2.bf16.msra.mxu0 %v628
        %696 = vmatprep.subr.bf16.mxu0 %v627
        %697 = vmatpush2.bf16.msra.mxu0 %v626
        %698 = vmatprep.subr.bf16.mxu0 %v625
        %699 = vmatpush2.bf16.msra.mxu0 %v624
        %700 = vmatprep.subr.bf16.mxu0 %v623
        %701 = vmatpush2.bf16.msra.mxu0 %v622
        %702 = vmatprep.mubr.bf16.mxu0 %v459
        %703 = vmatmul.mubr.bf16.gmra.mxu0 %v458
        %v704 = vpop.f32.mrf.mxu0
        %v705 = vadd.f32 %v503, %v704
        %v706 = vpop.f32.mrf.mxu0
        %v707 = vadd.f32 %v507, %v706
        %v708 = vpop.f32.mrf.mxu0
        %v709 = vadd.f32 %v503, %v708
        %v710 = vpop.f32.mrf.mxu0
        %v711 = vadd.f32 %v507, %v710
        %712 = vmatprep.mubr.bf16.mxu0 %v461
        %713 = vmatmul.mubr.bf16.gmra.mxu0 %v460
        %v714 = vpop.f32.mrf.mxu0
        %v715 = vadd.f32 %v503, %v714
        %v716 = vpop.f32.mrf.mxu0
        %v717 = vadd.f32 %v507, %v716
        %v718 = vpop.f32.mrf.mxu0
        %v719 = vadd.f32 %v503, %v718
        %v720 = vpop.f32.mrf.mxu0
        %v721 = vadd.f32 %v507, %v720
        %722 = vmatprep.mubr.bf16.mxu0 %v463
        %723 = vmatmul.mubr.bf16.gmra.mxu0 %v462
        %v724 = vpop.f32.mrf.mxu0
        %v725 = vadd.f32 %v503, %v724
        %v726 = vpop.f32.mrf.mxu0
        %v727 = vadd.f32 %v507, %v726
        %v728 = vpop.f32.mrf.mxu0
        %v729 = vadd.f32 %v503, %v728
        %v730 = vpop.f32.mrf.mxu0
        %v731 = vadd.f32 %v507, %v730
        %732 = vmatprep.mubr.bf16.mxu0 %v465
        %733 = vmatmul.mubr.bf16.gmra.mxu0 %v464
        %v734 = vpop.f32.mrf.mxu0
        %v735 = vadd.f32 %v503, %v734
        %v736 = vpop.f32.mrf.mxu0
        %v737 = vadd.f32 %v507, %v736
        %v738 = vpop.f32.mrf.mxu0
        %v739 = vadd.f32 %v503, %v738
        %v740 = vpop.f32.mrf.mxu0
        %v741 = vadd.f32 %v507, %v740
        %742 = vdwg.mxu0
        %v743 = vmax.f32 %v705, 0.0
        %v744 = vmax.f32 %v707, 0.0
        %v745 = vmax.f32 %v709, 0.0
        %v746 = vmax.f32 %v711, 0.0
        %v747 = vmax.f32 %v715, 0.0
        %v748 = vmax.f32 %v717, 0.0
        %v749 = vmax.f32 %v719, 0.0
        %v750 = vmax.f32 %v721, 0.0
        %v751 = vmax.f32 %v725, 0.0
        %v752 = vmax.f32 %v727, 0.0
        %v753 = vmax.f32 %v729, 0.0
        %v754 = vmax.f32 %v731, 0.0
        %v755 = vmax.f32 %v735, 0.0
        %v756 = vmax.f32 %v737, 0.0
        %v757 = vmax.f32 %v739, 0.0
        %v758 = vmax.f32 %v741, 0.0
        %p759 = scmp.eq.s32.totalorder %s26, 0
        // Predicated region
        $region41: #{tpu_custom_call.1} parent=39 // pred_check
          %p760 = pneg %p759
        $region42: #{tpu_custom_call.1} parent=39 // pred_check_branch
          %762 = sbr.rel (%p760) target = $region44
        $region43: #{tpu_custom_call.1} parent=39 // pred_region
          %763 = vst [vmem:[#allocation2] sm:$0xff] %v743
          %764 = vst [vmem:[#allocation2 + $0x8] sm:$0xff] %v744
          %765 = vst [vmem:[#allocation2 + $0x10] sm:$0xff] %v745
          %766 = vst [vmem:[#allocation2 + $0x18] sm:$0xff] %v746
          %767 = vst [vmem:[#allocation2 + $0x20] sm:$0xff] %v747
          %768 = vst [vmem:[#allocation2 + $0x28] sm:$0xff] %v748
          %769 = vst [vmem:[#allocation2 + $0x30] sm:$0xff] %v749
          %770 = vst [vmem:[#allocation2 + $0x38] sm:$0xff] %v750
          %771 = vst [vmem:[#allocation2 + $0x40] sm:$0xff] %v751
          %772 = vst [vmem:[#allocation2 + $0x48] sm:$0xff] %v752
          %773 = vst [vmem:[#allocation2 + $0x50] sm:$0xff] %v753
          %774 = vst [vmem:[#allocation2 + $0x58] sm:$0xff] %v754
          %775 = vst [vmem:[#allocation2 + $0x60] sm:$0xff] %v755
          %776 = vst [vmem:[#allocation2 + $0x68] sm:$0xff] %v756
          %777 = vst [vmem:[#allocation2 + $0x70] sm:$0xff] %v757
          %778 = vst [vmem:[#allocation2 + $0x78] sm:$0xff] %v758
        $region44: #{tpu_custom_call.1} parent=39 // pred_fallthru
          _
        %p779 = scmp.ne.s32.totalorder %s26, 0
        // Predicated region
        $region45: #{tpu_custom_call.1} parent=39 // pred_check
          %p780 = pneg %p779
        $region46: #{tpu_custom_call.1} parent=39 // pred_check_branch
          %782 = sbr.rel (%p780) target = $region48
        $region47: #{tpu_custom_call.1} parent=39 // pred_region
          %v783 = vld [vmem:[#allocation2] sm:$0xff]
          %v784 = vld [vmem:[#allocation2 + $0x8] sm:$0xff]
          %v785 = vld [vmem:[#allocation2 + $0x10] sm:$0xff]
          %v786 = vld [vmem:[#allocation2 + $0x18] sm:$0xff]
          %v787 = vld [vmem:[#allocation2 + $0x20] sm:$0xff]
          %v788 = vld [vmem:[#allocation2 + $0x28] sm:$0xff]
          %v789 = vld [vmem:[#allocation2 + $0x30] sm:$0xff]
          %v790 = vld [vmem:[#allocation2 + $0x38] sm:$0xff]
          %v791 = vld [vmem:[#allocation2 + $0x40] sm:$0xff]
          %v792 = vld [vmem:[#allocation2 + $0x48] sm:$0xff]
          %v793 = vld [vmem:[#allocation2 + $0x50] sm:$0xff]
          %v794 = vld [vmem:[#allocation2 + $0x58] sm:$0xff]
          %v795 = vld [vmem:[#allocation2 + $0x60] sm:$0xff]
          %v796 = vld [vmem:[#allocation2 + $0x68] sm:$0xff]
          %v797 = vld [vmem:[#allocation2 + $0x70] sm:$0xff]
          %v798 = vld [vmem:[#allocation2 + $0x78] sm:$0xff]
          %v799 = vmax.f32 %v783, %v743
          %v800 = vmax.f32 %v784, %v744
          %v801 = vmax.f32 %v785, %v745
          %v802 = vmax.f32 %v786, %v746
          %v803 = vmax.f32 %v787, %v747
          %v804 = vmax.f32 %v788, %v748
          %v805 = vmax.f32 %v789, %v749
          %v806 = vmax.f32 %v790, %v750
          %v807 = vmax.f32 %v791, %v751
          %v808 = vmax.f32 %v792, %v752
          %v809 = vmax.f32 %v793, %v753
          %v810 = vmax.f32 %v794, %v754
          %v811 = vmax.f32 %v795, %v755
          %v812 = vmax.f32 %v796, %v756
          %v813 = vmax.f32 %v797, %v757
          %v814 = vmax.f32 %v798, %v758
          %815 = vst [vmem:[#allocation2] sm:$0xff] %v799
          %816 = vst [vmem:[#allocation2 + $0x8] sm:$0xff] %v800
          %817 = vst [vmem:[#allocation2 + $0x10] sm:$0xff] %v801
          %818 = vst [vmem:[#allocation2 + $0x18] sm:$0xff] %v802
          %819 = vst [vmem:[#allocation2 + $0x20] sm:$0xff] %v803
          %820 = vst [vmem:[#allocation2 + $0x28] sm:$0xff] %v804
          %821 = vst [vmem:[#allocation2 + $0x30] sm:$0xff] %v805
          %822 = vst [vmem:[#allocation2 + $0x38] sm:$0xff] %v806
          %823 = vst [vmem:[#allocation2 + $0x40] sm:$0xff] %v807
          %824 = vst [vmem:[#allocation2 + $0x48] sm:$0xff] %v808
          %825 = vst [vmem:[#allocation2 + $0x50] sm:$0xff] %v809
          %826 = vst [vmem:[#allocation2 + $0x58] sm:$0xff] %v810
          %827 = vst [vmem:[#allocation2 + $0x60] sm:$0xff] %v811
          %828 = vst [vmem:[#allocation2 + $0x68] sm:$0xff] %v812
          %829 = vst [vmem:[#allocation2 + $0x70] sm:$0xff] %v813
          %830 = vst [vmem:[#allocation2 + $0x78] sm:$0xff] %v814
        $region48: #{tpu_custom_call.1} parent=39 // pred_fallthru
          _
        %p831 = scmp.eq.s32.totalorder %s26, 15
        // Predicated region
        $region49: #{tpu_custom_call.1} parent=39 // pred_check
          %p832 = pneg %p831
        $region50: #{tpu_custom_call.1} parent=39 // pred_check_branch
          %834 = sbr.rel (%p832) target = $region52
        $region51: #{tpu_custom_call.1} parent=39 // pred_region
          %v835 = vld [vmem:[#allocation2] sm:$0xff]
          %v836 = vld [vmem:[#allocation2 + $0x8] sm:$0xff]
          %v837 = vld [vmem:[#allocation2 + $0x10] sm:$0xff]
          %v838 = vld [vmem:[#allocation2 + $0x18] sm:$0xff]
          %v839 = vld [vmem:[#allocation2 + $0x20] sm:$0xff]
          %v840 = vld [vmem:[#allocation2 + $0x28] sm:$0xff]
          %v841 = vld [vmem:[#allocation2 + $0x30] sm:$0xff]
          %v842 = vld [vmem:[#allocation2 + $0x38] sm:$0xff]
          %v843 = vld [vmem:[#allocation2 + $0x40] sm:$0xff]
          %v844 = vld [vmem:[#allocation2 + $0x48] sm:$0xff]
          %v845 = vld [vmem:[#allocation2 + $0x50] sm:$0xff]
          %v846 = vld [vmem:[#allocation2 + $0x58] sm:$0xff]
          %v847 = vld [vmem:[#allocation2 + $0x60] sm:$0xff]
          %v848 = vld [vmem:[#allocation2 + $0x68] sm:$0xff]
          %v849 = vld [vmem:[#allocation2 + $0x70] sm:$0xff]
          %v850 = vld [vmem:[#allocation2 + $0x78] sm:$0xff]
          %851 = vst [vmem:[%s259] sm:$0xff] %v835
          %852 = vst [vmem:[%s259 + $0x8] sm:$0xff] %v836
          %853 = vst [vmem:[%s259 + $0x10] sm:$0xff] %v837
          %854 = vst [vmem:[%s259 + $0x18] sm:$0xff] %v838
          %855 = vst [vmem:[%s259 + $0x20] sm:$0xff] %v839
          %856 = vst [vmem:[%s259 + $0x28] sm:$0xff] %v840
          %857 = vst [vmem:[%s259 + $0x30] sm:$0xff] %v841
          %858 = vst [vmem:[%s259 + $0x38] sm:$0xff] %v842
          %859 = vst [vmem:[%s259 + $0x40] sm:$0xff] %v843
          %860 = vst [vmem:[%s259 + $0x48] sm:$0xff] %v844
          %861 = vst [vmem:[%s259 + $0x50] sm:$0xff] %v845
          %862 = vst [vmem:[%s259 + $0x58] sm:$0xff] %v846
          %863 = vst [vmem:[%s259 + $0x60] sm:$0xff] %v847
          %864 = vst [vmem:[%s259 + $0x68] sm:$0xff] %v848
          %865 = vst [vmem:[%s259 + $0x70] sm:$0xff] %v849
          %866 = vst [vmem:[%s259 + $0x78] sm:$0xff] %v850
        $region52: #{tpu_custom_call.1} parent=39 // pred_fallthru
          _
        %s867 = sand.u32 %s162, 1
        %s868 = scalar_lea.sflag [#allocation4], %s867
        %s869 = sand.u32 %s162, 1
        %s870 = smul.addr %s869, 128
        %s871 = scalar_lea.vmem [#allocation3], %s870
        // Predicated region
        $region53: #{tpu_custom_call.1} parent=39 // pred_check
          %p872 = pneg %p172
        $region54: #{tpu_custom_call.1} parent=39 // pred_check_branch
          %874 = sbr.rel (%p872) target = $region56
        $region55: #{tpu_custom_call.1} parent=39 // pred_region
          %s875 = smul.u32 8, %s25
          %s877 = ssub.s32 2048, 2048
          %878 = vsyncadd %s868, %s877
          %s879 = smul.addr %s875, 2
          %s880 = smul.addr %s24, 16
          %s881 = sadd.s32 %s879, %s880
          %s882 = smul.addr %s881, 128
          %s883 = scalar_lea.hbm %s5, %s882
          %s884 = sshll.u32 %s871, 4
          %s885 = int_to_ptr.vmem [resolvable:$true] %s884
          %890 = dma.vmem_to_hbm [thread:$0]  %s885, 2048, %s883, %s868, 256, 256, 16
        $region56: #{tpu_custom_call.1} parent=39 // pred_fallthru
          _
      $region40: #{tpu_custom_call.1} parent=5 // pred_fallthru
        _
      %p891 = scmp.le.s32.totalorder 2, %s14
      // Predicated region
      $region57: #{tpu_custom_call.1} parent=5 // pred_check
        %p892 = pneg %p891
      $region58: #{tpu_custom_call.1} parent=5 // pred_check_branch
        %894 = sbr.rel (%p892) target = $region60
      $region59: #{tpu_custom_call.1} parent=5 // pred_region
        %s895 = ssub.s32 %s14, 2
        // Predicated region
        $region61: #{tpu_custom_call.1} parent=59 // pred_check
          %p896 = pneg %p178
        $region62: #{tpu_custom_call.1} parent=59 // pred_check_branch
          %898 = sbr.rel (%p896) target = $region64
        $region63: #{tpu_custom_call.1} parent=59 // pred_region
          %s899 = sand.u32 %s163, 1
          %s900 = scalar_lea.sflag [#allocation4], %s899
          %s901 = sand.u32 %s163, 1
          %s902 = smul.addr %s901, 128
          %s903 = scalar_lea.vmem [#allocation3], %s902
          %904 = dma.done %s900, 2048
        $region64: #{tpu_custom_call.1} parent=59 // pred_fallthru
          _
      $region60: #{tpu_custom_call.1} parent=5 // pred_fallthru
        _
    $region6: #{tpu_custom_call.1} parent=1 // loop_footer
      %s18 = sadd.s32 1, %s14
    $region7: #{tpu_custom_call.1} parent=1 // loop_footer_branch
      %13 = sbr.rel target = $region3
    $region8: #{tpu_custom_call.1} parent=1 // loop_exit
      _
    %905 = vsyncpa [#allocation4], 1
    %s906 = scalar_lea.sflag [#allocation4], 1
    %907 = vsyncpa %s906, 1

</llo_original>
